<compile_context>
chip_gen: v5e
topology: v5e:2x2
jax: 0.10.0
libtpu: 0.0.40
codegen_flags: <defaults>
</compile_context>

<pallas_src>
import jax
import jax.numpy as jnp
from jax.experimental import pallas as pl
from jax.experimental.pallas import tpu as pltpu


def _round_up(a: int, b: int) -> int:
    return (a + b - 1) // b * b


def _isz(dt) -> int:
    return jnp.dtype(dt).itemsize


def _vmem_capacity_bytes() -> int:
    """Physical VMEM of the current chip; conservative 64 MiB fallback (v7x)."""
    try:
        return int(pltpu.get_tpu_info().vmem_capacity_bytes)
    except Exception:
        return 64 << 20


# ---------------------------------------------------------------------------
# Kernels
# ---------------------------------------------------------------------------

def _mlp_kernel_f32_out(x_ref, w13_ref, w2_ref, o_ref):
    """f32 output: accumulate directly into o_ref (resident across j)."""
    j = pl.program_id(1)

    x = x_ref[...]                                                     # (tm, H)
    gu = jnp.dot(x, w13_ref[...], preferred_element_type=jnp.float32)  # (tm, 2*tf)
    tf = gu.shape[1] // 2
    g = gu[:, :tf]
    u = gu[:, tf:]
    h = (g * jax.nn.sigmoid(g)) * u                                    # SiLU(w1 x) * (w3 x)
    p = jnp.dot(h.astype(w2_ref.dtype), w2_ref[...],
                preferred_element_type=jnp.float32)                    # (tm, H)

    @pl.when(j == 0)
    def _():
        o_ref[...] = p                      # write-on-first-step: no zero pass

    @pl.when(j > 0)
    def _():
        o_ref[...] += p


def _mlp_kernel_acc(x_ref, w13_ref, w2_ref, o_ref, acc_ref):
    """Non-f32 output: f32 accumulator scratch, cast/store on last step."""
    j = pl.program_id(1)

    x = x_ref[...]
    gu = jnp.dot(x, w13_ref[...], preferred_element_type=jnp.float32)
    tf = gu.shape[1] // 2
    g = gu[:, :tf]
    u = gu[:, tf:]
    h = (g * jax.nn.sigmoid(g)) * u
    p = jnp.dot(h.astype(w2_ref.dtype), w2_ref[...],
                preferred_element_type=jnp.float32)

    @pl.when(j == 0)
    def _():
        acc_ref[...] = p

    @pl.when(j > 0)
    def _():
        acc_ref[...] += p

    @pl.when(j == pl.num_programs(1) - 1)
    def _():
        o_ref[...] = acc_ref[...].astype(o_ref.dtype)


# ---------------------------------------------------------------------------
# One-time weight preparation (hoist out of the forward path!)
# ---------------------------------------------------------------------------

def prepare_mixtral_expert_weights(w1_t, w3_t, w2_t, *, tf=None):
    """Pad the FFN dim, fuse gate/up weights per tile, reshape for the kernel.

    Do this ONCE at weight-load / cache time (e.g. alongside casting to bf16),
    not per forward call.

    w1_t, w3_t: [H, F]   w2_t: [F, H]
    Returns (w13, w2r):  w13: [nf, H, 2*tf],  w2r: [nf, tf, H]
    """
    H, F = w1_t.shape
    assert w3_t.shape == (H, F) and w2_t.shape == (F, H)

    if tf is None:
        # bf16/fp8 weights: 512-wide ffn tiles; f32 weights: 256 so tiles also
        # fit v7x's 64 MiB VMEM.
        tf = 512 if _isz(w1_t.dtype) <= 2 else 256
    tf = min(tf, _round_up(F, 128))

    F_pad = _round_up(F, tf)
    if F_pad != F:
        # Zero padding is exact: silu(0)*0 == 0 and padded w2 rows are zero.
        w1_t = jnp.pad(w1_t, ((0, 0), (0, F_pad - F)))
        w3_t = jnp.pad(w3_t, ((0, 0), (0, F_pad - F)))
        w2_t = jnp.pad(w2_t, ((0, F_pad - F), (0, 0)))

    nf = F_pad // tf
    w13 = jnp.concatenate(
        [w1_t.reshape(H, nf, tf), w3_t.reshape(H, nf, tf)], axis=-1)
    w13 = jnp.transpose(w13, (1, 0, 2))          # (nf, H, 2*tf)
    w2r = w2_t.reshape(nf, tf, H)                # (nf, tf, H)
    return w13, w2r


# ---------------------------------------------------------------------------
# Forward (hot path) -- takes pre-fused weights
# ---------------------------------------------------------------------------

def _tile_bytes(tm, tf, H, x_isz, w_isz, out_isz, use_acc):
    b = 0
    b += 2 * tm * H * x_isz                       # x tile (double buffered)
    b += 2 * H * (2 * tf) * w_isz                 # fused w1|w3 tile
    b += 2 * tf * H * w_isz                       # w2 tile
    b += 2 * tm * H * out_isz                     # output tile
    if use_acc:
        b += tm * H * 4                           # f32 accumulator scratch
    # per-step intermediates: gu (f32), h cast (w dtype), p (f32)
    b += tm * (2 * tf) * 4 + tm * tf * w_isz + tm * H * 4
    return b


def _pick_tm(T, H, tf, x_isz, w_isz, out_isz, use_acc, vmem_cap, tm_req):
    t_cap = _round_up(T, 128)
    budget = vmem_cap - (12 << 20)                # headroom for compiler scratch
    candidates = [tm_req] if tm_req is not None else [512, 384, 256, 128]
    best = min(128, t_cap)
    for tm in candidates:
        tm_eff = min(tm, t_cap)
        if _tile_bytes(tm_eff, tf, H, x_isz, w_isz, out_isz, use_acc) <= budget:
            return tm_eff
        best = tm_eff
    return min(best, 128) if tm_req is None else best


def mixtral_block_sparse_top2_mlp(x, w13, w2r, *, tm=None):
    """x: [T, H], w13: [nf, H, 2*tf], w2r: [nf, tf, H]  ->  [T, H]."""
    T, H = x.shape
    nf, H2, two_tf = w13.shape
    tf = two_tf // 2
    assert H2 == H and w2r.shape == (nf, tf, H)

    out_dtype = x.dtype
    w_dtype = w13.dtype
    use_acc = out_dtype != jnp.float32

    if T == 0:
        # Expert that received no tokens (common in MoE dispatch).
        return jnp.zeros((0, H), out_dtype)

    vmem_cap = _vmem_capacity_bytes()
    tm_eff = _pick_tm(T, H, tf, _isz(x.dtype), _isz(w_dtype), _isz(out_dtype),
                      use_acc, vmem_cap, tm)

    T_pad = _round_up(T, tm_eff)
    if T_pad != T:
        x = jnp.pad(x, ((0, T_pad - T), (0, 0)))

    grid = (T_pad // tm_eff, nf)

    tile_bytes = _tile_bytes(tm_eff, tf, H, _isz(x.dtype), _isz(w_dtype),
                             _isz(out_dtype), use_acc)
    vmem_limit = int(min(max(tile_bytes + (8 << 20), 32 << 20),
                         vmem_cap))

    F_pad = nf * tf
    weight_bytes = (w13.size + w2r.size) * _isz(w_dtype)
    cost = pl.CostEstimate(
        flops=6 * T_pad * H * F_pad,
        transcendentals=T_pad * F_pad,
        # Weights are re-streamed once per token tile (grid[0]).
        bytes_accessed=grid[0] * weight_bytes
                       + T_pad * H * (_isz(x.dtype) + _isz(out_dtype)),
    )

    in_specs = [
        pl.BlockSpec((tm_eff, H), lambda i, j: (i, 0)),                # x
        pl.BlockSpec((None, H, 2 * tf), lambda i, j: (j, 0, 0)),       # fused w1|w3
        pl.BlockSpec((None, tf, H), lambda i, j: (j, 0, 0)),           # w2
    ]
    out_spec = pl.BlockSpec((tm_eff, H), lambda i, j: (i, 0))

    if use_acc:
        kernel = _mlp_kernel_acc
        scratch = [pltpu.VMEM((tm_eff, H), jnp.float32)]
    else:
        kernel = _mlp_kernel_f32_out
        scratch = []

    out = pl.pallas_call(
        kernel,
        out_shape=jax.ShapeDtypeStruct((T_pad, H), out_dtype),
        grid_spec=pltpu.PrefetchScalarGridSpec(
            num_scalar_prefetch=0,
            grid=grid,
            in_specs=in_specs,
            out_specs=out_spec,
            scratch_shapes=scratch,
        ),
        compiler_params=pltpu.CompilerParams(
            dimension_semantics=("parallel", "arbitrary"),
            vmem_limit_bytes=vmem_limit,
        ),
        cost_estimate=cost,
    )(x, w13, w2r)

    if T_pad != T:
        out = out[:T]
    return out


def mixtral_block_sparse_top2_mlp_raw(x, w1_t, w3_t, w2_t, *, tm=None, tf=None):
    """Convenience wrapper from raw (transposed) Linear weights.

    NOTE: re-fuses weights every call -- in production hoist
    `prepare_mixtral_expert_weights` to weight-load time and call
    `mixtral_block_sparse_top2_mlp` directly.
    """
    w13, w2r = prepare_mixtral_expert_weights(w1_t, w3_t, w2_t, tf=tf)
    return mixtral_block_sparse_top2_mlp(x, w13, w2r, tm=tm)


def _reference(x, w1_t, w3_t, w2_t):
    g = x @ w1_t
    u = x @ w3_t
    h = jax.nn.silu(g) * u
    return h @ w2_t


if __name__ == "__main__":
    # Small, shape-consistent config: hidden_size=128, intermediate_size=256,
    # 16 tokens routed to this expert.
    T, H, F = 16, 128, 256

    key = jax.random.PRNGKey(0)
    kx, k1, k2, k3 = jax.random.split(key, 4)
    x = jax.random.normal(kx, (T, H), dtype=jnp.float32)
    # Deterministic "init" of the Linear weights (stored transposed, see layout).
    w1_t = jax.random.normal(k1, (H, F), dtype=jnp.float32) * (1.0 / H**0.5)
    w3_t = jax.random.normal(k3, (H, F), dtype=jnp.float32) * (1.0 / H**0.5)
    w2_t = jax.random.normal(k2, (F, H), dtype=jnp.float32) * (1.0 / F**0.5)

    ref = _reference(x, w1_t, w3_t, w2_t)

    # --- weight prep hoisted out of the forward path (done once) ---
    w13_f32, w2r_f32 = prepare_mixtral_expert_weights(w1_t, w3_t, w2_t)
    w13_bf16, w2r_bf16 = prepare_mixtral_expert_weights(
        w1_t.astype(jnp.bfloat16), w3_t.astype(jnp.bfloat16),
        w2_t.astype(jnp.bfloat16))

    # --- f32 path (accumulates directly into the output block) ---
    out = mixtral_block_sparse_top2_mlp(x, w13_f32, w2r_f32)
    out = jax.block_until_ready(out)
    assert out.shape == (T, H)
    assert jnp.allclose(out, ref, atol=2e-3, rtol=2e-3), "f32 mismatch vs reference"

    # Second call reuses the pre-fused weights (no per-call weight traffic).
    out2 = jax.block_until_ready(mixtral_block_sparse_top2_mlp(x, w13_f32, w2r_f32))
    assert jnp.allclose(out2, out)

    # --- bf16 production path (weights cast once; f32 accumulation inside) ---
    out_bf16 = mixtral_block_sparse_top2_mlp(
        x.astype(jnp.bfloat16), w13_bf16, w2r_bf16)
    out_bf16 = jax.block_until_ready(out_bf16)
    assert out_bf16.shape == (T, H)
    assert jnp.allclose(out_bf16.astype(jnp.float32), ref, atol=0.2, rtol=0.2), \
        "bf16 mismatch vs reference"

    # --- empty-expert guard (no tokens routed to this expert) ---
    out_empty = mixtral_block_sparse_top2_mlp(
        jnp.zeros((0, H), jnp.float32), w13_f32, w2r_f32)
    assert out_empty.shape == (0, H)

    print("KERNEL_OK")
</pallas_src>

<mosaic_0001>
module attributes {stable_mosaic.version = 11 : i64} {
  func.func @_mlp_kernel_f32_out(%arg0: i32, %arg1: i32, %arg2: memref<128x128xf32, #tpu.memory_space<vmem>>, %arg3: memref<1x128x512xf32, #tpu.memory_space<vmem>>, %arg4: memref<1x256x128xf32, #tpu.memory_space<vmem>>, %arg5: memref<128x128xf32, #tpu.memory_space<vmem>>) attributes {dimension_semantics = [#tpu.dimension_semantics<parallel>, #tpu.dimension_semantics<arbitrary>], iteration_bounds = array<i64: 1, 1>, scalar_prefetch = 0 : i64, scratch_operands = 0 : i64, tpu.core_type = #tpu.core_type<tc>, window_params = [{transform_indices = @transform_0, window_bounds = array<i64: 128, 128>}, {transform_indices = @transform_1, window_bounds = array<i64: 1, 128, 512>}, {transform_indices = @transform_2, window_bounds = array<i64: 1, 256, 128>}, {transform_indices = @transform_3, window_bounds = array<i64: 128, 128>}]} {
    %c0 = arith.constant 0 : index
    %c0_0 = arith.constant 0 : index
    %0 = vector.load %arg2[%c0, %c0_0] : memref<128x128xf32, #tpu.memory_space<vmem>>, vector<128x128xf32>
    %c0_1 = arith.constant 0 : index
    %c0_2 = arith.constant 0 : index
    %c0_3 = arith.constant 0 : index
    %1 = vector.load %arg3[%c0_1, %c0_2, %c0_3] : memref<1x128x512xf32, #tpu.memory_space<vmem>>, vector<1x128x512xf32>
    %2 = vector.shape_cast %1 : vector<1x128x512xf32> to vector<128x512xf32>
    %cst = arith.constant dense<0.000000e+00> : vector<128x512xf32>
    %3 = tpu.matmul %0, %2, %cst {dimension_numbers = #tpu.dot_dimension_numbers<[1], [0], [0], [1], [0, 0, 1, 1], [], []>} : vector<128x128xf32>, vector<128x512xf32>, vector<128x512xf32> -> vector<128x512xf32>
    %4 = vector.extract_strided_slice %3 {offsets = [0, 0], sizes = [128, 256], strides = [1, 1]} : vector<128x512xf32> to vector<128x256xf32>
    %5 = vector.extract_strided_slice %3 {offsets = [0, 256], sizes = [128, 256], strides = [1, 1]} : vector<128x512xf32> to vector<128x256xf32>
    %6 = arith.negf %4 : vector<128x256xf32>
    %7 = math.exp %6 : vector<128x256xf32>
    %cst_4 = arith.constant 1.000000e+00 : f32
    %8 = vector.broadcast %cst_4 : f32 to vector<128x256xf32>
    %9 = arith.addf %8, %7 : vector<128x256xf32>
    %10 = arith.divf %8, %9 : vector<128x256xf32>
    %11 = arith.mulf %4, %10 : vector<128x256xf32>
    %12 = arith.mulf %11, %5 : vector<128x256xf32>
    %c0_5 = arith.constant 0 : index
    %c0_6 = arith.constant 0 : index
    %c0_7 = arith.constant 0 : index
    %13 = vector.load %arg4[%c0_5, %c0_6, %c0_7] : memref<1x256x128xf32, #tpu.memory_space<vmem>>, vector<1x256x128xf32>
    %14 = vector.shape_cast %13 : vector<1x256x128xf32> to vector<256x128xf32>
    %cst_8 = arith.constant dense<0.000000e+00> : vector<128x128xf32>
    %15 = tpu.matmul %12, %14, %cst_8 {dimension_numbers = #tpu.dot_dimension_numbers<[1], [0], [0], [1], [0, 0, 1, 1], [], []>} : vector<128x256xf32>, vector<256x128xf32>, vector<128x128xf32> -> vector<128x128xf32>
    %c0_i32 = arith.constant 0 : i32
    %16 = arith.cmpi eq, %arg1, %c0_i32 : i32
    %17 = arith.extui %16 : i1 to i32
    %c0_i32_9 = arith.constant 0 : i32
    %18 = arith.cmpi ne, %17, %c0_i32_9 : i32
    scf.if %18 {
      %c0_12 = arith.constant 0 : index
      %c0_13 = arith.constant 0 : index
      %22 = vector.load %arg5[%c0_12, %c0_13] : memref<128x128xf32, #tpu.memory_space<vmem>>, vector<128x128xf32>
      tpu.vector_store %arg5[%c0_12, %c0_13], %15 {strides = array<i32>} : memref<128x128xf32, #tpu.memory_space<vmem>>, vector<128x128xf32>,
    } else {
    }
    %c0_i32_10 = arith.constant 0 : i32
    %19 = arith.cmpi sgt, %arg1, %c0_i32_10 : i32
    %20 = arith.extui %19 : i1 to i32
    %c0_i32_11 = arith.constant 0 : i32
    %21 = arith.cmpi ne, %20, %c0_i32_11 : i32
    scf.if %21 {
      %c0_12 = arith.constant 0 : index
      %c0_13 = arith.constant 0 : index
      %22 = vector.load %arg5[%c0_12, %c0_13] : memref<128x128xf32, #tpu.memory_space<vmem>>, vector<128x128xf32>
      %23 = arith.addf %22, %15 : vector<128x128xf32>
      %c0_14 = arith.constant 0 : index
      %c0_15 = arith.constant 0 : index
      %24 = vector.load %arg5[%c0_14, %c0_15] : memref<128x128xf32, #tpu.memory_space<vmem>>, vector<128x128xf32>
      tpu.vector_store %arg5[%c0_14, %c0_15], %23 {strides = array<i32>} : memref<128x128xf32, #tpu.memory_space<vmem>>, vector<128x128xf32>,
    } else {
    }
    return
  }
  func.func @transform_0(%arg0: i32, %arg1: i32) -> (i32, i32) {
    %c0_i32 = arith.constant 0 : i32
    %c0_i32_0 = arith.constant 0 : i32
    return %arg0, %c0_i32 : i32, i32
  }
  func.func @transform_1(%arg0: i32, %arg1: i32) -> (i32, i32, i32) {
    %c0_i32 = arith.constant 0 : i32
    %c0_i32_0 = arith.constant 0 : i32
    %c0_i32_1 = arith.constant 0 : i32
    return %arg1, %c0_i32, %c0_i32_0 : i32, i32, i32
  }
  func.func @transform_2(%arg0: i32, %arg1: i32) -> (i32, i32, i32) {
    %c0_i32 = arith.constant 0 : i32
    %c0_i32_0 = arith.constant 0 : i32
    %c0_i32_1 = arith.constant 0 : i32
    return %arg1, %c0_i32, %c0_i32_0 : i32, i32, i32
  }
  func.func @transform_3(%arg0: i32, %arg1: i32) -> (i32, i32) {
    %c0_i32 = arith.constant 0 : i32
    %c0_i32_0 = arith.constant 0 : i32
    return %arg0, %c0_i32 : i32, i32
  }
}

</mosaic_0001>

<llo_original>
// kernel: tpu_custom_call.1
$region0: #{tpu_custom_call.1}
  #allocation0 [shape = 'u32[]', space=smem, size = 0x4, offset = 0x4, fixed_abs, tag = 'smem constant byte address 0x4 - core index']
  #allocation1 [shape = 'u32[72,128]{1,0:T(1,128)}', space=vmem, size = 0x9000, scoped, tag = 'internal scratch']
  %s0 = inlined_call_operand.hbm [shape: f32[128,128], index: 0, kind: input, shape index: {}]
  %s1 = inlined_call_operand.hbm [shape: f32[1,128,512], index: 1, kind: input, shape index: {}]
  %s2 = inlined_call_operand.hbm [shape: f32[1,256,128], index: 2, kind: input, shape index: {}]
  %s3 = inlined_call_operand.hbm [shape: f32[128,128], index: 3, kind: output, shape index: {}]
  %s4 = sld [smem:[#allocation0]]
  $region42: #{tpu_custom_call.1} parent=0
    _
  %s6 = ssub.s32 1, %s4
  %s7 = scalar_select 0, %s6, %s4
  $region1: #{tpu_custom_call.1} parent=0
    #allocation2 [shape = 'u8[65536]{0}', space=vmem, size = 0x10000, scoped, tag = 'input window, operand 0, single buffered']
    #allocation3 [shape = 's32[1]{0}', space=sflag, size = 0x4, scoped, tag = 'scoped memory for tpu_custom_call.1']
    #allocation4 [shape = 's32[1]{0}', space=sflag, size = 0x4, scoped, tag = 'scoped memory for tpu_custom_call.1']
    #allocation5 [shape = 'u8[262144]{0}', space=vmem, size = 0x40000, scoped, tag = 'input window, operand 1, single buffered']
    #allocation6 [shape = 's32[1]{0}', space=sflag, size = 0x4, scoped, tag = 'scoped memory for tpu_custom_call.1']
    #allocation7 [shape = 'u8[131072]{0}', space=vmem, size = 0x20000, scoped, tag = 'input window, operand 2, single buffered']
    #allocation8 [shape = 'u8[65536]{0}', space=vmem, size = 0x10000, scoped, tag = 'output window, operand 0, single buffered']
    %8 = vsyncpa [#allocation3], 0
    %9 = vsyncpa [#allocation6], 0
    %10 = vsyncpa [#allocation4], 0
    // Predicated region
    $region2: #{tpu_custom_call.1} parent=1 // pred_check
      _
    $region3: #{tpu_custom_call.1} parent=1 // pred_check_branch
      %12 = sbr.rel (0) target = $region5
    $region4: #{tpu_custom_call.1} parent=1 // pred_region
      %14 = vsyncadd [#allocation3], 0
      %s15 = sshll.u32 %s0, 4
      %s16 = int_to_ptr.hbm [resolvable:$true] %s15
      %s17 = sshll.u32 [#allocation2], 4
      %s18 = int_to_ptr.vmem [resolvable:$true] %s17
      %23 = dma.hbm_to_vmem [thread:$0]  %s16, 2048, %s18, [#allocation3], 128, 128, 8
    $region5: #{tpu_custom_call.1} parent=1 // pred_fallthru
      _
    // Predicated region
    $region6: #{tpu_custom_call.1} parent=1 // pred_check
      _
    $region7: #{tpu_custom_call.1} parent=1 // pred_check_branch
      %25 = sbr.rel (0) target = $region9
    $region8: #{tpu_custom_call.1} parent=1 // pred_region
      %27 = vsyncadd [#allocation6], 0
      %s28 = sshll.u32 %s1, 4
      %s29 = int_to_ptr.hbm [resolvable:$true] %s28
      %s30 = sshll.u32 [#allocation5], 4
      %s31 = int_to_ptr.vmem [resolvable:$true] %s30
      %36 = dma.hbm_to_vmem [thread:$0]  %s29, 8192, %s31, [#allocation6], 512, 512, 32
    $region9: #{tpu_custom_call.1} parent=1 // pred_fallthru
      _
    // Predicated region
    $region10: #{tpu_custom_call.1} parent=1 // pred_check
      _
    $region11: #{tpu_custom_call.1} parent=1 // pred_check_branch
      %38 = sbr.rel (0) target = $region13
    $region12: #{tpu_custom_call.1} parent=1 // pred_region
      %40 = vsyncadd [#allocation6], 0
      %s41 = sshll.u32 %s2, 4
      %s42 = int_to_ptr.hbm [resolvable:$true] %s41
      %s43 = sshll.u32 [#allocation7], 4
      %s44 = int_to_ptr.vmem [resolvable:$true] %s43
      %49 = dma.hbm_to_vmem [thread:$0]  %s42, 4096, %s44, [#allocation6], 128, 128, 8
    $region13: #{tpu_custom_call.1} parent=1 // pred_fallthru
      _
    // Predicated region
    $region14: #{tpu_custom_call.1} parent=1 // pred_check
      _
    $region15: #{tpu_custom_call.1} parent=1 // pred_check_branch
      %51 = sbr.rel (0) target = $region17
    $region16: #{tpu_custom_call.1} parent=1 // pred_region
      %53 = dma.done [#allocation3], 2048
    $region17: #{tpu_custom_call.1} parent=1 // pred_fallthru
      _
    // Predicated region
    $region18: #{tpu_custom_call.1} parent=1 // pred_check
      _
    $region19: #{tpu_custom_call.1} parent=1 // pred_check_branch
      %55 = sbr.rel (0) target = $region21
    $region20: #{tpu_custom_call.1} parent=1 // pred_region
      %57 = dma.done [#allocation6], 8192
    $region21: #{tpu_custom_call.1} parent=1 // pred_fallthru
      _
    // Predicated region
    $region22: #{tpu_custom_call.1} parent=1 // pred_check
      _
    $region23: #{tpu_custom_call.1} parent=1 // pred_check_branch
      %59 = sbr.rel (0) target = $region25
    $region24: #{tpu_custom_call.1} parent=1 // pred_region
      %61 = dma.done [#allocation6], 4096
    $region25: #{tpu_custom_call.1} parent=1 // pred_fallthru
      _
    %v62 = vld [vmem:[#allocation2] sm:$0xff]
    %v63 = vld [vmem:[#allocation2 + $0x8] sm:$0xff]
    %v64 = vld [vmem:[#allocation2 + $0x10] sm:$0xff]
    %v65 = vld [vmem:[#allocation2 + $0x18] sm:$0xff]
    %v66 = vld [vmem:[#allocation2 + $0x20] sm:$0xff]
    %v67 = vld [vmem:[#allocation2 + $0x28] sm:$0xff]
    %v68 = vld [vmem:[#allocation2 + $0x30] sm:$0xff]
    %v69 = vld [vmem:[#allocation2 + $0x38] sm:$0xff]
    %v70 = vld [vmem:[#allocation2 + $0x40] sm:$0xff]
    %v71 = vld [vmem:[#allocation2 + $0x48] sm:$0xff]
    %v72 = vld [vmem:[#allocation2 + $0x50] sm:$0xff]
    %v73 = vld [vmem:[#allocation2 + $0x58] sm:$0xff]
    %v74 = vld [vmem:[#allocation2 + $0x60] sm:$0xff]
    %v75 = vld [vmem:[#allocation2 + $0x68] sm:$0xff]
    %v76 = vld [vmem:[#allocation2 + $0x70] sm:$0xff]
    %v77 = vld [vmem:[#allocation2 + $0x78] sm:$0xff]
    %v78 = vld [vmem:[#allocation5] sm:$0xff]
    %v79 = vld [vmem:[#allocation5 + $0x8] sm:$0xff]
    %v80 = vld [vmem:[#allocation5 + $0x10] sm:$0xff]
    %v81 = vld [vmem:[#allocation5 + $0x18] sm:$0xff]
    %v82 = vld [vmem:[#allocation5 + $0x20] sm:$0xff]
    %v83 = vld [vmem:[#allocation5 + $0x28] sm:$0xff]
    %v84 = vld [vmem:[#allocation5 + $0x30] sm:$0xff]
    %v85 = vld [vmem:[#allocation5 + $0x38] sm:$0xff]
    %v86 = vld [vmem:[#allocation5 + $0x40] sm:$0xff]
    %v87 = vld [vmem:[#allocation5 + $0x48] sm:$0xff]
    %v88 = vld [vmem:[#allocation5 + $0x50] sm:$0xff]
    %v89 = vld [vmem:[#allocation5 + $0x58] sm:$0xff]
    %v90 = vld [vmem:[#allocation5 + $0x60] sm:$0xff]
    %v91 = vld [vmem:[#allocation5 + $0x68] sm:$0xff]
    %v92 = vld [vmem:[#allocation5 + $0x70] sm:$0xff]
    %v93 = vld [vmem:[#allocation5 + $0x78] sm:$0xff]
    %v94 = vld [vmem:[#allocation5 + $0x80] sm:$0xff]
    %v95 = vld [vmem:[#allocation5 + $0x88] sm:$0xff]
    %v96 = vld [vmem:[#allocation5 + $0x90] sm:$0xff]
    %v97 = vld [vmem:[#allocation5 + $0x98] sm:$0xff]
    %v98 = vld [vmem:[#allocation5 + $0xa0] sm:$0xff]
    %v99 = vld [vmem:[#allocation5 + $0xa8] sm:$0xff]
    %v100 = vld [vmem:[#allocation5 + $0xb0] sm:$0xff]
    %v101 = vld [vmem:[#allocation5 + $0xb8] sm:$0xff]
    %v102 = vld [vmem:[#allocation5 + $0xc0] sm:$0xff]
    %v103 = vld [vmem:[#allocation5 + $0xc8] sm:$0xff]
    %v104 = vld [vmem:[#allocation5 + $0xd0] sm:$0xff]
    %v105 = vld [vmem:[#allocation5 + $0xd8] sm:$0xff]
    %v106 = vld [vmem:[#allocation5 + $0xe0] sm:$0xff]
    %v107 = vld [vmem:[#allocation5 + $0xe8] sm:$0xff]
    %v108 = vld [vmem:[#allocation5 + $0xf0] sm:$0xff]
    %v109 = vld [vmem:[#allocation5 + $0xf8] sm:$0xff]
    %v110 = vld [vmem:[#allocation5 + $0x100] sm:$0xff]
    %v111 = vld [vmem:[#allocation5 + $0x108] sm:$0xff]
    %v112 = vld [vmem:[#allocation5 + $0x110] sm:$0xff]
    %v113 = vld [vmem:[#allocation5 + $0x118] sm:$0xff]
    %v114 = vld [vmem:[#allocation5 + $0x120] sm:$0xff]
    %v115 = vld [vmem:[#allocation5 + $0x128] sm:$0xff]
    %v116 = vld [vmem:[#allocation5 + $0x130] sm:$0xff]
    %v117 = vld [vmem:[#allocation5 + $0x138] sm:$0xff]
    %v118 = vld [vmem:[#allocation5 + $0x140] sm:$0xff]
    %v119 = vld [vmem:[#allocation5 + $0x148] sm:$0xff]
    %v120 = vld [vmem:[#allocation5 + $0x150] sm:$0xff]
    %v121 = vld [vmem:[#allocation5 + $0x158] sm:$0xff]
    %v122 = vld [vmem:[#allocation5 + $0x160] sm:$0xff]
    %v123 = vld [vmem:[#allocation5 + $0x168] sm:$0xff]
    %v124 = vld [vmem:[#allocation5 + $0x170] sm:$0xff]
    %v125 = vld [vmem:[#allocation5 + $0x178] sm:$0xff]
    %v126 = vld [vmem:[#allocation5 + $0x180] sm:$0xff]
    %v127 = vld [vmem:[#allocation5 + $0x188] sm:$0xff]
    %v128 = vld [vmem:[#allocation5 + $0x190] sm:$0xff]
    %v129 = vld [vmem:[#allocation5 + $0x198] sm:$0xff]
    %v130 = vld [vmem:[#allocation5 + $0x1a0] sm:$0xff]
    %v131 = vld [vmem:[#allocation5 + $0x1a8] sm:$0xff]
    %v132 = vld [vmem:[#allocation5 + $0x1b0] sm:$0xff]
    %v133 = vld [vmem:[#allocation5 + $0x1b8] sm:$0xff]
    %v134 = vld [vmem:[#allocation5 + $0x1c0] sm:$0xff]
    %v135 = vld [vmem:[#allocation5 + $0x1c8] sm:$0xff]
    %v136 = vld [vmem:[#allocation5 + $0x1d0] sm:$0xff]
    %v137 = vld [vmem:[#allocation5 + $0x1d8] sm:$0xff]
    %v138 = vld [vmem:[#allocation5 + $0x1e0] sm:$0xff]
    %v139 = vld [vmem:[#allocation5 + $0x1e8] sm:$0xff]
    %v140 = vld [vmem:[#allocation5 + $0x1f0] sm:$0xff]
    %v141 = vld [vmem:[#allocation5 + $0x1f8] sm:$0xff]
    %142 = vmatpush.msra.mxu0 %v138
    %143 = vmatpush.msra.mxu0 %v134
    %144 = vmatpush.msra.mxu0 %v130
    %145 = vmatpush.msra.mxu0 %v126
    %146 = vmatpush.msra.mxu0 %v122
    %147 = vmatpush.msra.mxu0 %v118
    %148 = vmatpush.msra.mxu0 %v114
    %149 = vmatpush.msra.mxu0 %v110
    %150 = vmatpush.msra.mxu0 %v106
    %151 = vmatpush.msra.mxu0 %v102
    %152 = vmatpush.msra.mxu0 %v98
    %153 = vmatpush.msra.mxu0 %v94
    %154 = vmatpush.msra.mxu0 %v90
    %155 = vmatpush.msra.mxu0 %v86
    %156 = vmatpush.msra.mxu0 %v82
    %157 = vmatpush.msra.mxu0 %v78
    %158 = vmatmul.f32.gmra.mxu0 %v62
    %v159 = vpop.f32.mrf.mxu0
    %v160 = vadd.f32 0.0, %v159
    %161 = vmatmul.f32.gmra.mxu0 %v63
    %v162 = vpop.f32.mrf.mxu0
    %v163 = vadd.f32 0.0, %v162
    %164 = vmatmul.f32.gmra.mxu0 %v64
    %v165 = vpop.f32.mrf.mxu0
    %v166 = vadd.f32 0.0, %v165
    %167 = vmatmul.f32.gmra.mxu0 %v65
    %v168 = vpop.f32.mrf.mxu0
    %v169 = vadd.f32 0.0, %v168
    %170 = vmatmul.f32.gmra.mxu0 %v66
    %v171 = vpop.f32.mrf.mxu0
    %v172 = vadd.f32 0.0, %v171
    %173 = vmatmul.f32.gmra.mxu0 %v67
    %v174 = vpop.f32.mrf.mxu0
    %v175 = vadd.f32 0.0, %v174
    %176 = vmatmul.f32.gmra.mxu0 %v68
    %v177 = vpop.f32.mrf.mxu0
    %v178 = vadd.f32 0.0, %v177
    %179 = vmatmul.f32.gmra.mxu0 %v69
    %v180 = vpop.f32.mrf.mxu0
    %v181 = vadd.f32 0.0, %v180
    %182 = vmatmul.f32.gmra.mxu0 %v70
    %v183 = vpop.f32.mrf.mxu0
    %v184 = vadd.f32 0.0, %v183
    %185 = vmatmul.f32.gmra.mxu0 %v71
    %v186 = vpop.f32.mrf.mxu0
    %v187 = vadd.f32 0.0, %v186
    %188 = vmatmul.f32.gmra.mxu0 %v72
    %v189 = vpop.f32.mrf.mxu0
    %v190 = vadd.f32 0.0, %v189
    %191 = vmatmul.f32.gmra.mxu0 %v73
    %v192 = vpop.f32.mrf.mxu0
    %v193 = vadd.f32 0.0, %v192
    %194 = vmatmul.f32.gmra.mxu0 %v74
    %v195 = vpop.f32.mrf.mxu0
    %v196 = vadd.f32 0.0, %v195
    %197 = vmatmul.f32.gmra.mxu0 %v75
    %v198 = vpop.f32.mrf.mxu0
    %v199 = vadd.f32 0.0, %v198
    %200 = vmatmul.f32.gmra.mxu0 %v76
    %v201 = vpop.f32.mrf.mxu0
    %v202 = vadd.f32 0.0, %v201
    %203 = vmatmul.f32.gmra.mxu0 %v77
    %v204 = vpop.f32.mrf.mxu0
    %v205 = vadd.f32 0.0, %v204
    %206 = vdwg.mxu0
    %207 = vmatpush.msra.mxu0 %v139
    %208 = vmatpush.msra.mxu0 %v135
    %209 = vmatpush.msra.mxu0 %v131
    %210 = vmatpush.msra.mxu0 %v127
    %211 = vmatpush.msra.mxu0 %v123
    %212 = vmatpush.msra.mxu0 %v119
    %213 = vmatpush.msra.mxu0 %v115
    %214 = vmatpush.msra.mxu0 %v111
    %215 = vmatpush.msra.mxu0 %v107
    %216 = vmatpush.msra.mxu0 %v103
    %217 = vmatpush.msra.mxu0 %v99
    %218 = vmatpush.msra.mxu0 %v95
    %219 = vmatpush.msra.mxu0 %v91
    %220 = vmatpush.msra.mxu0 %v87
    %221 = vmatpush.msra.mxu0 %v83
    %222 = vmatpush.msra.mxu0 %v79
    %223 = vmatmul.f32.gmra.mxu0 %v62
    %v224 = vpop.f32.mrf.mxu0
    %v225 = vadd.f32 0.0, %v224
    %226 = vmatmul.f32.gmra.mxu0 %v63
    %v227 = vpop.f32.mrf.mxu0
    %v228 = vadd.f32 0.0, %v227
    %229 = vmatmul.f32.gmra.mxu0 %v64
    %v230 = vpop.f32.mrf.mxu0
    %v231 = vadd.f32 0.0, %v230
    %232 = vmatmul.f32.gmra.mxu0 %v65
    %v233 = vpop.f32.mrf.mxu0
    %v234 = vadd.f32 0.0, %v233
    %235 = vmatmul.f32.gmra.mxu0 %v66
    %v236 = vpop.f32.mrf.mxu0
    %v237 = vadd.f32 0.0, %v236
    %238 = vmatmul.f32.gmra.mxu0 %v67
    %v239 = vpop.f32.mrf.mxu0
    %v240 = vadd.f32 0.0, %v239
    %241 = vmatmul.f32.gmra.mxu0 %v68
    %v242 = vpop.f32.mrf.mxu0
    %v243 = vadd.f32 0.0, %v242
    %244 = vmatmul.f32.gmra.mxu0 %v69
    %v245 = vpop.f32.mrf.mxu0
    %v246 = vadd.f32 0.0, %v245
    %247 = vmatmul.f32.gmra.mxu0 %v70
    %v248 = vpop.f32.mrf.mxu0
    %v249 = vadd.f32 0.0, %v248
    %250 = vmatmul.f32.gmra.mxu0 %v71
    %v251 = vpop.f32.mrf.mxu0
    %v252 = vadd.f32 0.0, %v251
    %253 = vmatmul.f32.gmra.mxu0 %v72
    %v254 = vpop.f32.mrf.mxu0
    %v255 = vadd.f32 0.0, %v254
    %256 = vmatmul.f32.gmra.mxu0 %v73
    %v257 = vpop.f32.mrf.mxu0
    %v258 = vadd.f32 0.0, %v257
    %259 = vmatmul.f32.gmra.mxu0 %v74
    %v260 = vpop.f32.mrf.mxu0
    %v261 = vadd.f32 0.0, %v260
    %262 = vmatmul.f32.gmra.mxu0 %v75
    %v263 = vpop.f32.mrf.mxu0
    %v264 = vadd.f32 0.0, %v263
    %265 = vmatmul.f32.gmra.mxu0 %v76
    %v266 = vpop.f32.mrf.mxu0
    %v267 = vadd.f32 0.0, %v266
    %268 = vmatmul.f32.gmra.mxu0 %v77
    %v269 = vpop.f32.mrf.mxu0
    %v270 = vadd.f32 0.0, %v269
    %271 = vdwg.mxu0
    %272 = vmatpush.msra.mxu0 %v140
    %273 = vmatpush.msra.mxu0 %v136
    %274 = vmatpush.msra.mxu0 %v132
    %275 = vmatpush.msra.mxu0 %v128
    %276 = vmatpush.msra.mxu0 %v124
    %277 = vmatpush.msra.mxu0 %v120
    %278 = vmatpush.msra.mxu0 %v116
    %279 = vmatpush.msra.mxu0 %v112
    %280 = vmatpush.msra.mxu0 %v108
    %281 = vmatpush.msra.mxu0 %v104
    %282 = vmatpush.msra.mxu0 %v100
    %283 = vmatpush.msra.mxu0 %v96
    %284 = vmatpush.msra.mxu0 %v92
    %285 = vmatpush.msra.mxu0 %v88
    %286 = vmatpush.msra.mxu0 %v84
    %287 = vmatpush.msra.mxu0 %v80
    %288 = vmatmul.f32.gmra.mxu0 %v62
    %v289 = vpop.f32.mrf.mxu0
    %v290 = vadd.f32 0.0, %v289
    %291 = vmatmul.f32.gmra.mxu0 %v63
    %v292 = vpop.f32.mrf.mxu0
    %v293 = vadd.f32 0.0, %v292
    %294 = vmatmul.f32.gmra.mxu0 %v64
    %v295 = vpop.f32.mrf.mxu0
    %v296 = vadd.f32 0.0, %v295
    %297 = vmatmul.f32.gmra.mxu0 %v65
    %v298 = vpop.f32.mrf.mxu0
    %v299 = vadd.f32 0.0, %v298
    %300 = vmatmul.f32.gmra.mxu0 %v66
    %v301 = vpop.f32.mrf.mxu0
    %v302 = vadd.f32 0.0, %v301
    %303 = vmatmul.f32.gmra.mxu0 %v67
    %v304 = vpop.f32.mrf.mxu0
    %v305 = vadd.f32 0.0, %v304
    %306 = vmatmul.f32.gmra.mxu0 %v68
    %v307 = vpop.f32.mrf.mxu0
    %v308 = vadd.f32 0.0, %v307
    %309 = vmatmul.f32.gmra.mxu0 %v69
    %v310 = vpop.f32.mrf.mxu0
    %v311 = vadd.f32 0.0, %v310
    %312 = vmatmul.f32.gmra.mxu0 %v70
    %v313 = vpop.f32.mrf.mxu0
    %v314 = vadd.f32 0.0, %v313
    %315 = vmatmul.f32.gmra.mxu0 %v71
    %v316 = vpop.f32.mrf.mxu0
    %v317 = vadd.f32 0.0, %v316
    %318 = vmatmul.f32.gmra.mxu0 %v72
    %v319 = vpop.f32.mrf.mxu0
    %v320 = vadd.f32 0.0, %v319
    %321 = vmatmul.f32.gmra.mxu0 %v73
    %v322 = vpop.f32.mrf.mxu0
    %v323 = vadd.f32 0.0, %v322
    %324 = vmatmul.f32.gmra.mxu0 %v74
    %v325 = vpop.f32.mrf.mxu0
    %v326 = vadd.f32 0.0, %v325
    %327 = vmatmul.f32.gmra.mxu0 %v75
    %v328 = vpop.f32.mrf.mxu0
    %v329 = vadd.f32 0.0, %v328
    %330 = vmatmul.f32.gmra.mxu0 %v76
    %v331 = vpop.f32.mrf.mxu0
    %v332 = vadd.f32 0.0, %v331
    %333 = vmatmul.f32.gmra.mxu0 %v77
    %v334 = vpop.f32.mrf.mxu0
    %v335 = vadd.f32 0.0, %v334
    %336 = vdwg.mxu0
    %337 = vmatpush.msra.mxu0 %v141
    %338 = vmatpush.msra.mxu0 %v137
    %339 = vmatpush.msra.mxu0 %v133
    %340 = vmatpush.msra.mxu0 %v129
    %341 = vmatpush.msra.mxu0 %v125
    %342 = vmatpush.msra.mxu0 %v121
    %343 = vmatpush.msra.mxu0 %v117
    %344 = vmatpush.msra.mxu0 %v113
    %345 = vmatpush.msra.mxu0 %v109
    %346 = vmatpush.msra.mxu0 %v105
    %347 = vmatpush.msra.mxu0 %v101
    %348 = vmatpush.msra.mxu0 %v97
    %349 = vmatpush.msra.mxu0 %v93
    %350 = vmatpush.msra.mxu0 %v89
    %351 = vmatpush.msra.mxu0 %v85
    %352 = vmatpush.msra.mxu0 %v81
    %353 = vmatmul.f32.gmra.mxu0 %v62
    %v354 = vpop.f32.mrf.mxu0
    %v355 = vadd.f32 0.0, %v354
    %356 = vmatmul.f32.gmra.mxu0 %v63
    %v357 = vpop.f32.mrf.mxu0
    %v358 = vadd.f32 0.0, %v357
    %359 = vmatmul.f32.gmra.mxu0 %v64
    %v360 = vpop.f32.mrf.mxu0
    %v361 = vadd.f32 0.0, %v360
    %362 = vmatmul.f32.gmra.mxu0 %v65
    %v363 = vpop.f32.mrf.mxu0
    %v364 = vadd.f32 0.0, %v363
    %365 = vmatmul.f32.gmra.mxu0 %v66
    %v366 = vpop.f32.mrf.mxu0
    %v367 = vadd.f32 0.0, %v366
    %368 = vmatmul.f32.gmra.mxu0 %v67
    %v369 = vpop.f32.mrf.mxu0
    %v370 = vadd.f32 0.0, %v369
    %371 = vmatmul.f32.gmra.mxu0 %v68
    %v372 = vpop.f32.mrf.mxu0
    %v373 = vadd.f32 0.0, %v372
    %374 = vmatmul.f32.gmra.mxu0 %v69
    %v375 = vpop.f32.mrf.mxu0
    %v376 = vadd.f32 0.0, %v375
    %377 = vmatmul.f32.gmra.mxu0 %v70
    %v378 = vpop.f32.mrf.mxu0
    %v379 = vadd.f32 0.0, %v378
    %380 = vmatmul.f32.gmra.mxu0 %v71
    %v381 = vpop.f32.mrf.mxu0
    %v382 = vadd.f32 0.0, %v381
    %383 = vmatmul.f32.gmra.mxu0 %v72
    %v384 = vpop.f32.mrf.mxu0
    %v385 = vadd.f32 0.0, %v384
    %386 = vmatmul.f32.gmra.mxu0 %v73
    %v387 = vpop.f32.mrf.mxu0
    %v388 = vadd.f32 0.0, %v387
    %389 = vmatmul.f32.gmra.mxu0 %v74
    %v390 = vpop.f32.mrf.mxu0
    %v391 = vadd.f32 0.0, %v390
    %392 = vmatmul.f32.gmra.mxu0 %v75
    %v393 = vpop.f32.mrf.mxu0
    %v394 = vadd.f32 0.0, %v393
    %395 = vmatmul.f32.gmra.mxu0 %v76
    %v396 = vpop.f32.mrf.mxu0
    %v397 = vadd.f32 0.0, %v396
    %398 = vmatmul.f32.gmra.mxu0 %v77
    %v399 = vpop.f32.mrf.mxu0
    %v400 = vadd.f32 0.0, %v399
    %401 = vdwg.mxu0
    %v402 = vxor.u32 %v160, 2147483648
    %v403 = vxor.u32 %v225, 2147483648
    %v404 = vxor.u32 %v163, 2147483648
    %v405 = vxor.u32 %v228, 2147483648
    %v406 = vxor.u32 %v166, 2147483648
    %v407 = vxor.u32 %v231, 2147483648
    %v408 = vxor.u32 %v169, 2147483648
    %v409 = vxor.u32 %v234, 2147483648
    %v410 = vxor.u32 %v172, 2147483648
    %v411 = vxor.u32 %v237, 2147483648
    %v412 = vxor.u32 %v175, 2147483648
    %v413 = vxor.u32 %v240, 2147483648
    %v414 = vxor.u32 %v178, 2147483648
    %v415 = vxor.u32 %v243, 2147483648
    %v416 = vxor.u32 %v181, 2147483648
    %v417 = vxor.u32 %v246, 2147483648
    %v418 = vxor.u32 %v184, 2147483648
    %v419 = vxor.u32 %v249, 2147483648
    %v420 = vxor.u32 %v187, 2147483648
    %v421 = vxor.u32 %v252, 2147483648
    %v422 = vxor.u32 %v190, 2147483648
    %v423 = vxor.u32 %v255, 2147483648
    %v424 = vxor.u32 %v193, 2147483648
    %v425 = vxor.u32 %v258, 2147483648
    %v426 = vxor.u32 %v196, 2147483648
    %v427 = vxor.u32 %v261, 2147483648
    %v428 = vxor.u32 %v199, 2147483648
    %v429 = vxor.u32 %v264, 2147483648
    %v430 = vxor.u32 %v202, 2147483648
    %v431 = vxor.u32 %v267, 2147483648
    %v432 = vxor.u32 %v205, 2147483648
    %v433 = vxor.u32 %v270, 2147483648
    %v434 = vmul.f32 %v402, 1.442695
    %v435 = vpow.pop %v434
    %v436 = vmul.f32 %v403, 1.442695
    %v437 = vpow.pop %v436
    %v438 = vmul.f32 %v404, 1.442695
    %v439 = vpow.pop %v438
    %v440 = vmul.f32 %v405, 1.442695
    %v441 = vpow.pop %v440
    %v442 = vmul.f32 %v406, 1.442695
    %v443 = vpow.pop %v442
    %v444 = vmul.f32 %v407, 1.442695
    %v445 = vpow.pop %v444
    %v446 = vmul.f32 %v408, 1.442695
    %v447 = vpow.pop %v446
    %v448 = vmul.f32 %v409, 1.442695
    %v449 = vpow.pop %v448
    %v450 = vmul.f32 %v410, 1.442695
    %v451 = vpow.pop %v450
    %v452 = vmul.f32 %v411, 1.442695
    %v453 = vpow.pop %v452
    %v454 = vmul.f32 %v412, 1.442695
    %v455 = vpow.pop %v454
    %v456 = vmul.f32 %v413, 1.442695
    %v457 = vpow.pop %v456
    %v458 = vmul.f32 %v414, 1.442695
    %v459 = vpow.pop %v458
    %v460 = vmul.f32 %v415, 1.442695
    %v461 = vpow.pop %v460
    %v462 = vmul.f32 %v416, 1.442695
    %v463 = vpow.pop %v462
    %v464 = vmul.f32 %v417, 1.442695
    %v465 = vpow.pop %v464
    %v466 = vmul.f32 %v418, 1.442695
    %v467 = vpow.pop %v466
    %v468 = vmul.f32 %v419, 1.442695
    %v469 = vpow.pop %v468
    %v470 = vmul.f32 %v420, 1.442695
    %v471 = vpow.pop %v470
    %v472 = vmul.f32 %v421, 1.442695
    %v473 = vpow.pop %v472
    %v474 = vmul.f32 %v422, 1.442695
    %v475 = vpow.pop %v474
    %v476 = vmul.f32 %v423, 1.442695
    %v477 = vpow.pop %v476
    %v478 = vmul.f32 %v424, 1.442695
    %v479 = vpow.pop %v478
    %v480 = vmul.f32 %v425, 1.442695
    %v481 = vpow.pop %v480
    %v482 = vmul.f32 %v426, 1.442695
    %v483 = vpow.pop %v482
    %v484 = vmul.f32 %v427, 1.442695
    %v485 = vpow.pop %v484
    %v486 = vmul.f32 %v428, 1.442695
    %v487 = vpow.pop %v486
    %v488 = vmul.f32 %v429, 1.442695
    %v489 = vpow.pop %v488
    %v490 = vmul.f32 %v430, 1.442695
    %v491 = vpow.pop %v490
    %v492 = vmul.f32 %v431, 1.442695
    %v493 = vpow.pop %v492
    %v494 = vmul.f32 %v432, 1.442695
    %v495 = vpow.pop %v494
    %v496 = vmul.f32 %v433, 1.442695
    %v497 = vpow.pop %v496
    %v498 = vadd.f32 %v435, 1.0
    %v499 = vadd.f32 %v437, 1.0
    %v500 = vadd.f32 %v439, 1.0
    %v501 = vadd.f32 %v441, 1.0
    %v502 = vadd.f32 %v443, 1.0
    %v503 = vadd.f32 %v445, 1.0
    %v504 = vadd.f32 %v447, 1.0
    %v505 = vadd.f32 %v449, 1.0
    %v506 = vadd.f32 %v451, 1.0
    %v507 = vadd.f32 %v453, 1.0
    %v508 = vadd.f32 %v455, 1.0
    %v509 = vadd.f32 %v457, 1.0
    %v510 = vadd.f32 %v459, 1.0
    %v511 = vadd.f32 %v461, 1.0
    %v512 = vadd.f32 %v463, 1.0
    %v513 = vadd.f32 %v465, 1.0
    %v514 = vadd.f32 %v467, 1.0
    %v515 = vadd.f32 %v469, 1.0
    %v516 = vadd.f32 %v471, 1.0
    %v517 = vadd.f32 %v473, 1.0
    %v518 = vadd.f32 %v475, 1.0
    %v519 = vadd.f32 %v477, 1.0
    %v520 = vadd.f32 %v479, 1.0
    %v521 = vadd.f32 %v481, 1.0
    %v522 = vadd.f32 %v483, 1.0
    %v523 = vadd.f32 %v485, 1.0
    %v524 = vadd.f32 %v487, 1.0
    %v525 = vadd.f32 %v489, 1.0
    %v526 = vadd.f32 %v491, 1.0
    %v527 = vadd.f32 %v493, 1.0
    %v528 = vadd.f32 %v495, 1.0
    %v529 = vadd.f32 %v497, 1.0
    %v530 = vrcp.pop %v498
    %v531 = vmul.f32 %v498, %v530
    %v532 = vsub.f32 1.0, %v531
    %v533 = vmul.f32 %v530, %v532
    %v534 = vadd.f32 %v530, %v533
    %vm535 = vweird.f32 %v498
    %vm536 = vweird.f32 %v530
    %vm537 = vmor %vm535, %vm536
    %v538 = vsel %vm537, %v530, %v534
    %v539 = vand.u32 2147483647, %v498
    %vm540 = vcmp.eq.f32.partialorder %v539, 8.507059e+37
    %v541 = vand.u32 %v498, 2147483648
    %v542 = vor.u32 1.1754944e-38, %v541
    %v543 = vsel %vm540, %v542, %v538
    %v544 = vmul.f32 1.0, %v543
    %v545 = vrcp.pop %v499
    %v546 = vmul.f32 %v499, %v545
    %v547 = vsub.f32 1.0, %v546
    %v548 = vmul.f32 %v545, %v547
    %v549 = vadd.f32 %v545, %v548
    %vm550 = vweird.f32 %v499
    %vm551 = vweird.f32 %v545
    %vm552 = vmor %vm550, %vm551
    %v553 = vsel %vm552, %v545, %v549
    %v554 = vand.u32 2147483647, %v499
    %vm555 = vcmp.eq.f32.partialorder %v554, 8.507059e+37
    %v556 = vand.u32 %v499, 2147483648
    %v557 = vor.u32 1.1754944e-38, %v556
    %v558 = vsel %vm555, %v557, %v553
    %v559 = vmul.f32 1.0, %v558
    %v560 = vrcp.pop %v500
    %v561 = vmul.f32 %v500, %v560
    %v562 = vsub.f32 1.0, %v561
    %v563 = vmul.f32 %v560, %v562
    %v564 = vadd.f32 %v560, %v563
    %vm565 = vweird.f32 %v500
    %vm566 = vweird.f32 %v560
    %vm567 = vmor %vm565, %vm566
    %v568 = vsel %vm567, %v560, %v564
    %v569 = vand.u32 2147483647, %v500
    %vm570 = vcmp.eq.f32.partialorder %v569, 8.507059e+37
    %v571 = vand.u32 %v500, 2147483648
    %v572 = vor.u32 1.1754944e-38, %v571
    %v573 = vsel %vm570, %v572, %v568
    %v574 = vmul.f32 1.0, %v573
    %v575 = vrcp.pop %v501
    %v576 = vmul.f32 %v501, %v575
    %v577 = vsub.f32 1.0, %v576
    %v578 = vmul.f32 %v575, %v577
    %v579 = vadd.f32 %v575, %v578
    %vm580 = vweird.f32 %v501
    %vm581 = vweird.f32 %v575
    %vm582 = vmor %vm580, %vm581
    %v583 = vsel %vm582, %v575, %v579
    %v584 = vand.u32 2147483647, %v501
    %vm585 = vcmp.eq.f32.partialorder %v584, 8.507059e+37
    %v586 = vand.u32 %v501, 2147483648
    %v587 = vor.u32 1.1754944e-38, %v586
    %v588 = vsel %vm585, %v587, %v583
    %v589 = vmul.f32 1.0, %v588
    %v590 = vrcp.pop %v502
    %v591 = vmul.f32 %v502, %v590
    %v592 = vsub.f32 1.0, %v591
    %v593 = vmul.f32 %v590, %v592
    %v594 = vadd.f32 %v590, %v593
    %vm595 = vweird.f32 %v502
    %vm596 = vweird.f32 %v590
    %vm597 = vmor %vm595, %vm596
    %v598 = vsel %vm597, %v590, %v594
    %v599 = vand.u32 2147483647, %v502
    %vm600 = vcmp.eq.f32.partialorder %v599, 8.507059e+37
    %v601 = vand.u32 %v502, 2147483648
    %v602 = vor.u32 1.1754944e-38, %v601
    %v603 = vsel %vm600, %v602, %v598
    %v604 = vmul.f32 1.0, %v603
    %v605 = vrcp.pop %v503
    %v606 = vmul.f32 %v503, %v605
    %v607 = vsub.f32 1.0, %v606
    %v608 = vmul.f32 %v605, %v607
    %v609 = vadd.f32 %v605, %v608
    %vm610 = vweird.f32 %v503
    %vm611 = vweird.f32 %v605
    %vm612 = vmor %vm610, %vm611
    %v613 = vsel %vm612, %v605, %v609
    %v614 = vand.u32 2147483647, %v503
    %vm615 = vcmp.eq.f32.partialorder %v614, 8.507059e+37
    %v616 = vand.u32 %v503, 2147483648
    %v617 = vor.u32 1.1754944e-38, %v616
    %v618 = vsel %vm615, %v617, %v613
    %v619 = vmul.f32 1.0, %v618
    %v620 = vrcp.pop %v504
    %v621 = vmul.f32 %v504, %v620
    %v622 = vsub.f32 1.0, %v621
    %v623 = vmul.f32 %v620, %v622
    %v624 = vadd.f32 %v620, %v623
    %vm625 = vweird.f32 %v504
    %vm626 = vweird.f32 %v620
    %vm627 = vmor %vm625, %vm626
    %v628 = vsel %vm627, %v620, %v624
    %v629 = vand.u32 2147483647, %v504
    %vm630 = vcmp.eq.f32.partialorder %v629, 8.507059e+37
    %v631 = vand.u32 %v504, 2147483648
    %v632 = vor.u32 1.1754944e-38, %v631
    %v633 = vsel %vm630, %v632, %v628
    %v634 = vmul.f32 1.0, %v633
    %v635 = vrcp.pop %v505
    %v636 = vmul.f32 %v505, %v635
    %v637 = vsub.f32 1.0, %v636
    %v638 = vmul.f32 %v635, %v637
    %v639 = vadd.f32 %v635, %v638
    %vm640 = vweird.f32 %v505
    %vm641 = vweird.f32 %v635
    %vm642 = vmor %vm640, %vm641
    %v643 = vsel %vm642, %v635, %v639
    %v644 = vand.u32 2147483647, %v505
    %vm645 = vcmp.eq.f32.partialorder %v644, 8.507059e+37
    %v646 = vand.u32 %v505, 2147483648
    %v647 = vor.u32 1.1754944e-38, %v646
    %v648 = vsel %vm645, %v647, %v643
    %v649 = vmul.f32 1.0, %v648
    %v650 = vrcp.pop %v506
    %v651 = vmul.f32 %v506, %v650
    %v652 = vsub.f32 1.0, %v651
    %v653 = vmul.f32 %v650, %v652
    %v654 = vadd.f32 %v650, %v653
    %vm655 = vweird.f32 %v506
    %vm656 = vweird.f32 %v650
    %vm657 = vmor %vm655, %vm656
    %v658 = vsel %vm657, %v650, %v654
    %v659 = vand.u32 2147483647, %v506
    %vm660 = vcmp.eq.f32.partialorder %v659, 8.507059e+37
    %v661 = vand.u32 %v506, 2147483648
    %v662 = vor.u32 1.1754944e-38, %v661
    %v663 = vsel %vm660, %v662, %v658
    %v664 = vmul.f32 1.0, %v663
    %v665 = vrcp.pop %v507
    %v666 = vmul.f32 %v507, %v665
    %v667 = vsub.f32 1.0, %v666
    %v668 = vmul.f32 %v665, %v667
    %v669 = vadd.f32 %v665, %v668
    %vm670 = vweird.f32 %v507
    %vm671 = vweird.f32 %v665
    %vm672 = vmor %vm670, %vm671
    %v673 = vsel %vm672, %v665, %v669
    %v674 = vand.u32 2147483647, %v507
    %vm675 = vcmp.eq.f32.partialorder %v674, 8.507059e+37
    %v676 = vand.u32 %v507, 2147483648
    %v677 = vor.u32 1.1754944e-38, %v676
    %v678 = vsel %vm675, %v677, %v673
    %v679 = vmul.f32 1.0, %v678
    %v680 = vrcp.pop %v508
    %v681 = vmul.f32 %v508, %v680
    %v682 = vsub.f32 1.0, %v681
    %v683 = vmul.f32 %v680, %v682
    %v684 = vadd.f32 %v680, %v683
    %vm685 = vweird.f32 %v508
    %vm686 = vweird.f32 %v680
    %vm687 = vmor %vm685, %vm686
    %v688 = vsel %vm687, %v680, %v684
    %v689 = vand.u32 2147483647, %v508
    %vm690 = vcmp.eq.f32.partialorder %v689, 8.507059e+37
    %v691 = vand.u32 %v508, 2147483648
    %v692 = vor.u32 1.1754944e-38, %v691
    %v693 = vsel %vm690, %v692, %v688
    %v694 = vmul.f32 1.0, %v693
    %v695 = vrcp.pop %v509
    %v696 = vmul.f32 %v509, %v695
    %v697 = vsub.f32 1.0, %v696
    %v698 = vmul.f32 %v695, %v697
    %v699 = vadd.f32 %v695, %v698
    %vm700 = vweird.f32 %v509
    %vm701 = vweird.f32 %v695
    %vm702 = vmor %vm700, %vm701
    %v703 = vsel %vm702, %v695, %v699
    %v704 = vand.u32 2147483647, %v509
    %vm705 = vcmp.eq.f32.partialorder %v704, 8.507059e+37
    %v706 = vand.u32 %v509, 2147483648
    %v707 = vor.u32 1.1754944e-38, %v706
    %v708 = vsel %vm705, %v707, %v703
    %v709 = vmul.f32 1.0, %v708
    %v710 = vrcp.pop %v510
    %v711 = vmul.f32 %v510, %v710
    %v712 = vsub.f32 1.0, %v711
    %v713 = vmul.f32 %v710, %v712
    %v714 = vadd.f32 %v710, %v713
    %vm715 = vweird.f32 %v510
    %vm716 = vweird.f32 %v710
    %vm717 = vmor %vm715, %vm716
    %v718 = vsel %vm717, %v710, %v714
    %v719 = vand.u32 2147483647, %v510
    %vm720 = vcmp.eq.f32.partialorder %v719, 8.507059e+37
    %v721 = vand.u32 %v510, 2147483648
    %v722 = vor.u32 1.1754944e-38, %v721
    %v723 = vsel %vm720, %v722, %v718
    %v724 = vmul.f32 1.0, %v723
    %v725 = vrcp.pop %v511
    %v726 = vmul.f32 %v511, %v725
    %v727 = vsub.f32 1.0, %v726
    %v728 = vmul.f32 %v725, %v727
    %v729 = vadd.f32 %v725, %v728
    %vm730 = vweird.f32 %v511
    %vm731 = vweird.f32 %v725
    %vm732 = vmor %vm730, %vm731
    %v733 = vsel %vm732, %v725, %v729
    %v734 = vand.u32 2147483647, %v511
    %vm735 = vcmp.eq.f32.partialorder %v734, 8.507059e+37
    %v736 = vand.u32 %v511, 2147483648
    %v737 = vor.u32 1.1754944e-38, %v736
    %v738 = vsel %vm735, %v737, %v733
    %v739 = vmul.f32 1.0, %v738
    %v740 = vrcp.pop %v512
    %v741 = vmul.f32 %v512, %v740
    %v742 = vsub.f32 1.0, %v741
    %v743 = vmul.f32 %v740, %v742
    %v744 = vadd.f32 %v740, %v743
    %vm745 = vweird.f32 %v512
    %vm746 = vweird.f32 %v740
    %vm747 = vmor %vm745, %vm746
    %v748 = vsel %vm747, %v740, %v744
    %v749 = vand.u32 2147483647, %v512
    %vm750 = vcmp.eq.f32.partialorder %v749, 8.507059e+37
    %v751 = vand.u32 %v512, 2147483648
    %v752 = vor.u32 1.1754944e-38, %v751
    %v753 = vsel %vm750, %v752, %v748
    %v754 = vmul.f32 1.0, %v753
    %v755 = vrcp.pop %v513
    %v756 = vmul.f32 %v513, %v755
    %v757 = vsub.f32 1.0, %v756
    %v758 = vmul.f32 %v755, %v757
    %v759 = vadd.f32 %v755, %v758
    %vm760 = vweird.f32 %v513
    %vm761 = vweird.f32 %v755
    %vm762 = vmor %vm760, %vm761
    %v763 = vsel %vm762, %v755, %v759
    %v764 = vand.u32 2147483647, %v513
    %vm765 = vcmp.eq.f32.partialorder %v764, 8.507059e+37
    %v766 = vand.u32 %v513, 2147483648
    %v767 = vor.u32 1.1754944e-38, %v766
    %v768 = vsel %vm765, %v767, %v763
    %v769 = vmul.f32 1.0, %v768
    %v770 = vrcp.pop %v514
    %v771 = vmul.f32 %v514, %v770
    %v772 = vsub.f32 1.0, %v771
    %v773 = vmul.f32 %v770, %v772
    %v774 = vadd.f32 %v770, %v773
    %vm775 = vweird.f32 %v514
    %vm776 = vweird.f32 %v770
    %vm777 = vmor %vm775, %vm776
    %v778 = vsel %vm777, %v770, %v774
    %v779 = vand.u32 2147483647, %v514
    %vm780 = vcmp.eq.f32.partialorder %v779, 8.507059e+37
    %v781 = vand.u32 %v514, 2147483648
    %v782 = vor.u32 1.1754944e-38, %v781
    %v783 = vsel %vm780, %v782, %v778
    %v784 = vmul.f32 1.0, %v783
    %v785 = vrcp.pop %v515
    %v786 = vmul.f32 %v515, %v785
    %v787 = vsub.f32 1.0, %v786
    %v788 = vmul.f32 %v785, %v787
    %v789 = vadd.f32 %v785, %v788
    %vm790 = vweird.f32 %v515
    %vm791 = vweird.f32 %v785
    %vm792 = vmor %vm790, %vm791
    %v793 = vsel %vm792, %v785, %v789
    %v794 = vand.u32 2147483647, %v515
    %vm795 = vcmp.eq.f32.partialorder %v794, 8.507059e+37
    %v796 = vand.u32 %v515, 2147483648
    %v797 = vor.u32 1.1754944e-38, %v796
    %v798 = vsel %vm795, %v797, %v793
    %v799 = vmul.f32 1.0, %v798
    %v800 = vrcp.pop %v516
    %v801 = vmul.f32 %v516, %v800
    %v802 = vsub.f32 1.0, %v801
    %v803 = vmul.f32 %v800, %v802
    %v804 = vadd.f32 %v800, %v803
    %vm805 = vweird.f32 %v516
    %vm806 = vweird.f32 %v800
    %vm807 = vmor %vm805, %vm806
    %v808 = vsel %vm807, %v800, %v804
    %v809 = vand.u32 2147483647, %v516
    %vm810 = vcmp.eq.f32.partialorder %v809, 8.507059e+37
    %v811 = vand.u32 %v516, 2147483648
    %v812 = vor.u32 1.1754944e-38, %v811
    %v813 = vsel %vm810, %v812, %v808
    %v814 = vmul.f32 1.0, %v813
    %v815 = vrcp.pop %v517
    %v816 = vmul.f32 %v517, %v815
    %v817 = vsub.f32 1.0, %v816
    %v818 = vmul.f32 %v815, %v817
    %v819 = vadd.f32 %v815, %v818
    %vm820 = vweird.f32 %v517
    %vm821 = vweird.f32 %v815
    %vm822 = vmor %vm820, %vm821
    %v823 = vsel %vm822, %v815, %v819
    %v824 = vand.u32 2147483647, %v517
    %vm825 = vcmp.eq.f32.partialorder %v824, 8.507059e+37
    %v826 = vand.u32 %v517, 2147483648
    %v827 = vor.u32 1.1754944e-38, %v826
    %v828 = vsel %vm825, %v827, %v823
    %v829 = vmul.f32 1.0, %v828
    %v830 = vrcp.pop %v518
    %v831 = vmul.f32 %v518, %v830
    %v832 = vsub.f32 1.0, %v831
    %v833 = vmul.f32 %v830, %v832
    %v834 = vadd.f32 %v830, %v833
    %vm835 = vweird.f32 %v518
    %vm836 = vweird.f32 %v830
    %vm837 = vmor %vm835, %vm836
    %v838 = vsel %vm837, %v830, %v834
    %v839 = vand.u32 2147483647, %v518
    %vm840 = vcmp.eq.f32.partialorder %v839, 8.507059e+37
    %v841 = vand.u32 %v518, 2147483648
    %v842 = vor.u32 1.1754944e-38, %v841
    %v843 = vsel %vm840, %v842, %v838
    %v844 = vmul.f32 1.0, %v843
    %v845 = vrcp.pop %v519
    %v846 = vmul.f32 %v519, %v845
    %v847 = vsub.f32 1.0, %v846
    %v848 = vmul.f32 %v845, %v847
    %v849 = vadd.f32 %v845, %v848
    %vm850 = vweird.f32 %v519
    %vm851 = vweird.f32 %v845
    %vm852 = vmor %vm850, %vm851
    %v853 = vsel %vm852, %v845, %v849
    %v854 = vand.u32 2147483647, %v519
    %vm855 = vcmp.eq.f32.partialorder %v854, 8.507059e+37
    %v856 = vand.u32 %v519, 2147483648
    %v857 = vor.u32 1.1754944e-38, %v856
    %v858 = vsel %vm855, %v857, %v853
    %v859 = vmul.f32 1.0, %v858
    %v860 = vrcp.pop %v520
    %v861 = vmul.f32 %v520, %v860
    %v862 = vsub.f32 1.0, %v861
    %v863 = vmul.f32 %v860, %v862
    %v864 = vadd.f32 %v860, %v863
    %vm865 = vweird.f32 %v520
    %vm866 = vweird.f32 %v860
    %vm867 = vmor %vm865, %vm866
    %v868 = vsel %vm867, %v860, %v864
    %v869 = vand.u32 2147483647, %v520
    %vm870 = vcmp.eq.f32.partialorder %v869, 8.507059e+37
    %v871 = vand.u32 %v520, 2147483648
    %v872 = vor.u32 1.1754944e-38, %v871
    %v873 = vsel %vm870, %v872, %v868
    %v874 = vmul.f32 1.0, %v873
    %v875 = vrcp.pop %v521
    %v876 = vmul.f32 %v521, %v875
    %v877 = vsub.f32 1.0, %v876
    %v878 = vmul.f32 %v875, %v877
    %v879 = vadd.f32 %v875, %v878
    %vm880 = vweird.f32 %v521
    %vm881 = vweird.f32 %v875
    %vm882 = vmor %vm880, %vm881
    %v883 = vsel %vm882, %v875, %v879
    %v884 = vand.u32 2147483647, %v521
    %vm885 = vcmp.eq.f32.partialorder %v884, 8.507059e+37
    %v886 = vand.u32 %v521, 2147483648
    %v887 = vor.u32 1.1754944e-38, %v886
    %v888 = vsel %vm885, %v887, %v883
    %v889 = vmul.f32 1.0, %v888
    %v890 = vrcp.pop %v522
    %v891 = vmul.f32 %v522, %v890
    %v892 = vsub.f32 1.0, %v891
    %v893 = vmul.f32 %v890, %v892
    %v894 = vadd.f32 %v890, %v893
    %vm895 = vweird.f32 %v522
    %vm896 = vweird.f32 %v890
    %vm897 = vmor %vm895, %vm896
    %v898 = vsel %vm897, %v890, %v894
    %v899 = vand.u32 2147483647, %v522
    %vm900 = vcmp.eq.f32.partialorder %v899, 8.507059e+37
    %v901 = vand.u32 %v522, 2147483648
    %v902 = vor.u32 1.1754944e-38, %v901
    %v903 = vsel %vm900, %v902, %v898
    %v904 = vmul.f32 1.0, %v903
    %v905 = vrcp.pop %v523
    %v906 = vmul.f32 %v523, %v905
    %v907 = vsub.f32 1.0, %v906
    %v908 = vmul.f32 %v905, %v907
    %v909 = vadd.f32 %v905, %v908
    %vm910 = vweird.f32 %v523
    %vm911 = vweird.f32 %v905
    %vm912 = vmor %vm910, %vm911
    %v913 = vsel %vm912, %v905, %v909
    %v914 = vand.u32 2147483647, %v523
    %vm915 = vcmp.eq.f32.partialorder %v914, 8.507059e+37
    %v916 = vand.u32 %v523, 2147483648
    %v917 = vor.u32 1.1754944e-38, %v916
    %v918 = vsel %vm915, %v917, %v913
    %v919 = vmul.f32 1.0, %v918
    %v920 = vrcp.pop %v524
    %v921 = vmul.f32 %v524, %v920
    %v922 = vsub.f32 1.0, %v921
    %v923 = vmul.f32 %v920, %v922
    %v924 = vadd.f32 %v920, %v923
    %vm925 = vweird.f32 %v524
    %vm926 = vweird.f32 %v920
    %vm927 = vmor %vm925, %vm926
    %v928 = vsel %vm927, %v920, %v924
    %v929 = vand.u32 2147483647, %v524
    %vm930 = vcmp.eq.f32.partialorder %v929, 8.507059e+37
    %v931 = vand.u32 %v524, 2147483648
    %v932 = vor.u32 1.1754944e-38, %v931
    %v933 = vsel %vm930, %v932, %v928
    %v934 = vmul.f32 1.0, %v933
    %v935 = vrcp.pop %v525
    %v936 = vmul.f32 %v525, %v935
    %v937 = vsub.f32 1.0, %v936
    %v938 = vmul.f32 %v935, %v937
    %v939 = vadd.f32 %v935, %v938
    %vm940 = vweird.f32 %v525
    %vm941 = vweird.f32 %v935
    %vm942 = vmor %vm940, %vm941
    %v943 = vsel %vm942, %v935, %v939
    %v944 = vand.u32 2147483647, %v525
    %vm945 = vcmp.eq.f32.partialorder %v944, 8.507059e+37
    %v946 = vand.u32 %v525, 2147483648
    %v947 = vor.u32 1.1754944e-38, %v946
    %v948 = vsel %vm945, %v947, %v943
    %v949 = vmul.f32 1.0, %v948
    %v950 = vrcp.pop %v526
    %v951 = vmul.f32 %v526, %v950
    %v952 = vsub.f32 1.0, %v951
    %v953 = vmul.f32 %v950, %v952
    %v954 = vadd.f32 %v950, %v953
    %vm955 = vweird.f32 %v526
    %vm956 = vweird.f32 %v950
    %vm957 = vmor %vm955, %vm956
    %v958 = vsel %vm957, %v950, %v954
    %v959 = vand.u32 2147483647, %v526
    %vm960 = vcmp.eq.f32.partialorder %v959, 8.507059e+37
    %v961 = vand.u32 %v526, 2147483648
    %v962 = vor.u32 1.1754944e-38, %v961
    %v963 = vsel %vm960, %v962, %v958
    %v964 = vmul.f32 1.0, %v963
    %v965 = vrcp.pop %v527
    %v966 = vmul.f32 %v527, %v965
    %v967 = vsub.f32 1.0, %v966
    %v968 = vmul.f32 %v965, %v967
    %v969 = vadd.f32 %v965, %v968
    %vm970 = vweird.f32 %v527
    %vm971 = vweird.f32 %v965
    %vm972 = vmor %vm970, %vm971
    %v973 = vsel %vm972, %v965, %v969
    %v974 = vand.u32 2147483647, %v527
    %vm975 = vcmp.eq.f32.partialorder %v974, 8.507059e+37
    %v976 = vand.u32 %v527, 2147483648
    %v977 = vor.u32 1.1754944e-38, %v976
    %v978 = vsel %vm975, %v977, %v973
    %v979 = vmul.f32 1.0, %v978
    %v980 = vrcp.pop %v528
    %v981 = vmul.f32 %v528, %v980
    %v982 = vsub.f32 1.0, %v981
    %v983 = vmul.f32 %v980, %v982
    %v984 = vadd.f32 %v980, %v983
    %vm985 = vweird.f32 %v528
    %vm986 = vweird.f32 %v980
    %vm987 = vmor %vm985, %vm986
    %v988 = vsel %vm987, %v980, %v984
    %v989 = vand.u32 2147483647, %v528
    %vm990 = vcmp.eq.f32.partialorder %v989, 8.507059e+37
    %v991 = vand.u32 %v528, 2147483648
    %v992 = vor.u32 1.1754944e-38, %v991
    %v993 = vsel %vm990, %v992, %v988
    %v994 = vmul.f32 1.0, %v993
    %v995 = vrcp.pop %v529
    %v996 = vmul.f32 %v529, %v995
    %v997 = vsub.f32 1.0, %v996
    %v998 = vmul.f32 %v995, %v997
    %v999 = vadd.f32 %v995, %v998
    %vm1000 = vweird.f32 %v529
    %vm1001 = vweird.f32 %v995
    %vm1002 = vmor %vm1000, %vm1001
    %v1003 = vsel %vm1002, %v995, %v999
    %v1004 = vand.u32 2147483647, %v529
    %vm1005 = vcmp.eq.f32.partialorder %v1004, 8.507059e+37
    %v1006 = vand.u32 %v529, 2147483648
    %v1007 = vor.u32 1.1754944e-38, %v1006
    %v1008 = vsel %vm1005, %v1007, %v1003
    %v1009 = vmul.f32 1.0, %v1008
    %v1010 = vmul.f32 %v160, %v544
    %v1011 = vmul.f32 %v225, %v559
    %v1012 = vmul.f32 %v163, %v574
    %v1013 = vmul.f32 %v228, %v589
    %v1014 = vmul.f32 %v166, %v604
    %v1015 = vmul.f32 %v231, %v619
    %v1016 = vmul.f32 %v169, %v634
    %v1017 = vmul.f32 %v234, %v649
    %v1018 = vmul.f32 %v172, %v664
    %v1019 = vmul.f32 %v237, %v679
    %v1020 = vmul.f32 %v175, %v694
    %v1021 = vmul.f32 %v240, %v709
    %v1022 = vmul.f32 %v178, %v724
    %v1023 = vmul.f32 %v243, %v739
    %v1024 = vmul.f32 %v181, %v754
    %v1025 = vmul.f32 %v246, %v769
    %v1026 = vmul.f32 %v184, %v784
    %v1027 = vmul.f32 %v249, %v799
    %v1028 = vmul.f32 %v187, %v814
    %v1029 = vmul.f32 %v252, %v829
    %v1030 = vmul.f32 %v190, %v844
    %v1031 = vmul.f32 %v255, %v859
    %v1032 = vmul.f32 %v193, %v874
    %v1033 = vmul.f32 %v258, %v889
    %v1034 = vmul.f32 %v196, %v904
    %v1035 = vmul.f32 %v261, %v919
    %v1036 = vmul.f32 %v199, %v934
    %v1037 = vmul.f32 %v264, %v949
    %v1038 = vmul.f32 %v202, %v964
    %v1039 = vmul.f32 %v267, %v979
    %v1040 = vmul.f32 %v205, %v994
    %v1041 = vmul.f32 %v270, %v1009
    %v1042 = vmul.f32 %v1010, %v290
    %v1043 = vmul.f32 %v1011, %v355
    %v1044 = vmul.f32 %v1012, %v293
    %v1045 = vmul.f32 %v1013, %v358
    %v1046 = vmul.f32 %v1014, %v296
    %v1047 = vmul.f32 %v1015, %v361
    %v1048 = vmul.f32 %v1016, %v299
    %v1049 = vmul.f32 %v1017, %v364
    %v1050 = vmul.f32 %v1018, %v302
    %v1051 = vmul.f32 %v1019, %v367
    %v1052 = vmul.f32 %v1020, %v305
    %v1053 = vmul.f32 %v1021, %v370
    %v1054 = vmul.f32 %v1022, %v308
    %v1055 = vmul.f32 %v1023, %v373
    %v1056 = vmul.f32 %v1024, %v311
    %v1057 = vmul.f32 %v1025, %v376
    %v1058 = vmul.f32 %v1026, %v314
    %v1059 = vmul.f32 %v1027, %v379
    %v1060 = vmul.f32 %v1028, %v317
    %v1061 = vmul.f32 %v1029, %v382
    %v1062 = vmul.f32 %v1030, %v320
    %v1063 = vmul.f32 %v1031, %v385
    %v1064 = vmul.f32 %v1032, %v323
    %v1065 = vmul.f32 %v1033, %v388
    %v1066 = vmul.f32 %v1034, %v326
    %v1067 = vmul.f32 %v1035, %v391
    %v1068 = vmul.f32 %v1036, %v329
    %v1069 = vmul.f32 %v1037, %v394
    %v1070 = vmul.f32 %v1038, %v332
    %v1071 = vmul.f32 %v1039, %v397
    %v1072 = vmul.f32 %v1040, %v335
    %v1073 = vmul.f32 %v1041, %v400
    %v1074 = vld [vmem:[#allocation7] sm:$0xff]
    %v1075 = vld [vmem:[#allocation7 + $0x8] sm:$0xff]
    %v1076 = vld [vmem:[#allocation7 + $0x10] sm:$0xff]
    %v1077 = vld [vmem:[#allocation7 + $0x18] sm:$0xff]
    %v1078 = vld [vmem:[#allocation7 + $0x20] sm:$0xff]
    %v1079 = vld [vmem:[#allocation7 + $0x28] sm:$0xff]
    %v1080 = vld [vmem:[#allocation7 + $0x30] sm:$0xff]
    %v1081 = vld [vmem:[#allocation7 + $0x38] sm:$0xff]
    %v1082 = vld [vmem:[#allocation7 + $0x40] sm:$0xff]
    %v1083 = vld [vmem:[#allocation7 + $0x48] sm:$0xff]
    %v1084 = vld [vmem:[#allocation7 + $0x50] sm:$0xff]
    %v1085 = vld [vmem:[#allocation7 + $0x58] sm:$0xff]
    %v1086 = vld [vmem:[#allocation7 + $0x60] sm:$0xff]
    %v1087 = vld [vmem:[#allocation7 + $0x68] sm:$0xff]
    %v1088 = vld [vmem:[#allocation7 + $0x70] sm:$0xff]
    %v1089 = vld [vmem:[#allocation7 + $0x78] sm:$0xff]
    %v1090 = vld [vmem:[#allocation7 + $0x80] sm:$0xff]
    %v1091 = vld [vmem:[#allocation7 + $0x88] sm:$0xff]
    %v1092 = vld [vmem:[#allocation7 + $0x90] sm:$0xff]
    %v1093 = vld [vmem:[#allocation7 + $0x98] sm:$0xff]
    %v1094 = vld [vmem:[#allocation7 + $0xa0] sm:$0xff]
    %v1095 = vld [vmem:[#allocation7 + $0xa8] sm:$0xff]
    %v1096 = vld [vmem:[#allocation7 + $0xb0] sm:$0xff]
    %v1097 = vld [vmem:[#allocation7 + $0xb8] sm:$0xff]
    %v1098 = vld [vmem:[#allocation7 + $0xc0] sm:$0xff]
    %v1099 = vld [vmem:[#allocation7 + $0xc8] sm:$0xff]
    %v1100 = vld [vmem:[#allocation7 + $0xd0] sm:$0xff]
    %v1101 = vld [vmem:[#allocation7 + $0xd8] sm:$0xff]
    %v1102 = vld [vmem:[#allocation7 + $0xe0] sm:$0xff]
    %v1103 = vld [vmem:[#allocation7 + $0xe8] sm:$0xff]
    %v1104 = vld [vmem:[#allocation7 + $0xf0] sm:$0xff]
    %v1105 = vld [vmem:[#allocation7 + $0xf8] sm:$0xff]
    %1106 = vmatpush.msra.mxu0 %v1089
    %1107 = vmatpush.msra.mxu0 %v1088
    %1108 = vmatpush.msra.mxu0 %v1087
    %1109 = vmatpush.msra.mxu0 %v1086
    %1110 = vmatpush.msra.mxu0 %v1085
    %1111 = vmatpush.msra.mxu0 %v1084
    %1112 = vmatpush.msra.mxu0 %v1083
    %1113 = vmatpush.msra.mxu0 %v1082
    %1114 = vmatpush.msra.mxu0 %v1081
    %1115 = vmatpush.msra.mxu0 %v1080
    %1116 = vmatpush.msra.mxu0 %v1079
    %1117 = vmatpush.msra.mxu0 %v1078
    %1118 = vmatpush.msra.mxu0 %v1077
    %1119 = vmatpush.msra.mxu0 %v1076
    %1120 = vmatpush.msra.mxu0 %v1075
    %1121 = vmatpush.msra.mxu0 %v1074
    %1122 = vmatmul.f32.gmra.mxu0 %v1042
    %v1123 = vpop.f32.mrf.mxu0
    %v1124 = vadd.f32 0.0, %v1123
    %1125 = vmatmul.f32.gmra.mxu0 %v1044
    %v1126 = vpop.f32.mrf.mxu0
    %v1127 = vadd.f32 0.0, %v1126
    %1128 = vmatmul.f32.gmra.mxu0 %v1046
    %v1129 = vpop.f32.mrf.mxu0
    %v1130 = vadd.f32 0.0, %v1129
    %1131 = vmatmul.f32.gmra.mxu0 %v1048
    %v1132 = vpop.f32.mrf.mxu0
    %v1133 = vadd.f32 0.0, %v1132
    %1134 = vmatmul.f32.gmra.mxu0 %v1050
    %v1135 = vpop.f32.mrf.mxu0
    %v1136 = vadd.f32 0.0, %v1135
    %1137 = vmatmul.f32.gmra.mxu0 %v1052
    %v1138 = vpop.f32.mrf.mxu0
    %v1139 = vadd.f32 0.0, %v1138
    %1140 = vmatmul.f32.gmra.mxu0 %v1054
    %v1141 = vpop.f32.mrf.mxu0
    %v1142 = vadd.f32 0.0, %v1141
    %1143 = vmatmul.f32.gmra.mxu0 %v1056
    %v1144 = vpop.f32.mrf.mxu0
    %v1145 = vadd.f32 0.0, %v1144
    %1146 = vmatmul.f32.gmra.mxu0 %v1058
    %v1147 = vpop.f32.mrf.mxu0
    %v1148 = vadd.f32 0.0, %v1147
    %1149 = vmatmul.f32.gmra.mxu0 %v1060
    %v1150 = vpop.f32.mrf.mxu0
    %v1151 = vadd.f32 0.0, %v1150
    %1152 = vmatmul.f32.gmra.mxu0 %v1062
    %v1153 = vpop.f32.mrf.mxu0
    %v1154 = vadd.f32 0.0, %v1153
    %1155 = vmatmul.f32.gmra.mxu0 %v1064
    %v1156 = vpop.f32.mrf.mxu0
    %v1157 = vadd.f32 0.0, %v1156
    %1158 = vmatmul.f32.gmra.mxu0 %v1066
    %v1159 = vpop.f32.mrf.mxu0
    %v1160 = vadd.f32 0.0, %v1159
    %1161 = vmatmul.f32.gmra.mxu0 %v1068
    %v1162 = vpop.f32.mrf.mxu0
    %v1163 = vadd.f32 0.0, %v1162
    %1164 = vmatmul.f32.gmra.mxu0 %v1070
    %v1165 = vpop.f32.mrf.mxu0
    %v1166 = vadd.f32 0.0, %v1165
    %1167 = vmatmul.f32.gmra.mxu0 %v1072
    %v1168 = vpop.f32.mrf.mxu0
    %v1169 = vadd.f32 0.0, %v1168
    %1170 = vdwg.mxu0
    %1171 = vmatpush.msra.mxu0 %v1105
    %1172 = vmatpush.msra.mxu0 %v1104
    %1173 = vmatpush.msra.mxu0 %v1103
    %1174 = vmatpush.msra.mxu0 %v1102
    %1175 = vmatpush.msra.mxu0 %v1101
    %1176 = vmatpush.msra.mxu0 %v1100
    %1177 = vmatpush.msra.mxu0 %v1099
    %1178 = vmatpush.msra.mxu0 %v1098
    %1179 = vmatpush.msra.mxu0 %v1097
    %1180 = vmatpush.msra.mxu0 %v1096
    %1181 = vmatpush.msra.mxu0 %v1095
    %1182 = vmatpush.msra.mxu0 %v1094
    %1183 = vmatpush.msra.mxu0 %v1093
    %1184 = vmatpush.msra.mxu0 %v1092
    %1185 = vmatpush.msra.mxu0 %v1091
    %1186 = vmatpush.msra.mxu0 %v1090
    %1187 = vmatmul.f32.gmra.mxu0 %v1043
    %v1188 = vpop.f32.mrf.mxu0
    %v1189 = vadd.f32 %v1124, %v1188
    %1190 = vmatmul.f32.gmra.mxu0 %v1045
    %v1191 = vpop.f32.mrf.mxu0
    %v1192 = vadd.f32 %v1127, %v1191
    %1193 = vmatmul.f32.gmra.mxu0 %v1047
    %v1194 = vpop.f32.mrf.mxu0
    %v1195 = vadd.f32 %v1130, %v1194
    %1196 = vmatmul.f32.gmra.mxu0 %v1049
    %v1197 = vpop.f32.mrf.mxu0
    %v1198 = vadd.f32 %v1133, %v1197
    %1199 = vmatmul.f32.gmra.mxu0 %v1051
    %v1200 = vpop.f32.mrf.mxu0
    %v1201 = vadd.f32 %v1136, %v1200
    %1202 = vmatmul.f32.gmra.mxu0 %v1053
    %v1203 = vpop.f32.mrf.mxu0
    %v1204 = vadd.f32 %v1139, %v1203
    %1205 = vmatmul.f32.gmra.mxu0 %v1055
    %v1206 = vpop.f32.mrf.mxu0
    %v1207 = vadd.f32 %v1142, %v1206
    %1208 = vmatmul.f32.gmra.mxu0 %v1057
    %v1209 = vpop.f32.mrf.mxu0
    %v1210 = vadd.f32 %v1145, %v1209
    %1211 = vmatmul.f32.gmra.mxu0 %v1059
    %v1212 = vpop.f32.mrf.mxu0
    %v1213 = vadd.f32 %v1148, %v1212
    %1214 = vmatmul.f32.gmra.mxu0 %v1061
    %v1215 = vpop.f32.mrf.mxu0
    %v1216 = vadd.f32 %v1151, %v1215
    %1217 = vmatmul.f32.gmra.mxu0 %v1063
    %v1218 = vpop.f32.mrf.mxu0
    %v1219 = vadd.f32 %v1154, %v1218
    %1220 = vmatmul.f32.gmra.mxu0 %v1065
    %v1221 = vpop.f32.mrf.mxu0
    %v1222 = vadd.f32 %v1157, %v1221
    %1223 = vmatmul.f32.gmra.mxu0 %v1067
    %v1224 = vpop.f32.mrf.mxu0
    %v1225 = vadd.f32 %v1160, %v1224
    %1226 = vmatmul.f32.gmra.mxu0 %v1069
    %v1227 = vpop.f32.mrf.mxu0
    %v1228 = vadd.f32 %v1163, %v1227
    %1229 = vmatmul.f32.gmra.mxu0 %v1071
    %v1230 = vpop.f32.mrf.mxu0
    %v1231 = vadd.f32 %v1166, %v1230
    %1232 = vmatmul.f32.gmra.mxu0 %v1073
    %v1233 = vpop.f32.mrf.mxu0
    %v1234 = vadd.f32 %v1169, %v1233
    %1235 = vdwg.mxu0
    %p1236 = scmp.eq.s32.totalorder 0, 0
    // Predicated region
    $region26: #{tpu_custom_call.1} parent=1 // pred_check
      %p1237 = pneg %p1236
    $region27: #{tpu_custom_call.1} parent=1 // pred_check_branch
      %1239 = sbr.rel (%p1237) target = $region29
    $region28: #{tpu_custom_call.1} parent=1 // pred_region
      %1240 = vst [vmem:[#allocation8] sm:$0xff] %v1189
      %1241 = vst [vmem:[#allocation8 + $0x8] sm:$0xff] %v1192
      %1242 = vst [vmem:[#allocation8 + $0x10] sm:$0xff] %v1195
      %1243 = vst [vmem:[#allocation8 + $0x18] sm:$0xff] %v1198
      %1244 = vst [vmem:[#allocation8 + $0x20] sm:$0xff] %v1201
      %1245 = vst [vmem:[#allocation8 + $0x28] sm:$0xff] %v1204
      %1246 = vst [vmem:[#allocation8 + $0x30] sm:$0xff] %v1207
      %1247 = vst [vmem:[#allocation8 + $0x38] sm:$0xff] %v1210
      %1248 = vst [vmem:[#allocation8 + $0x40] sm:$0xff] %v1213
      %1249 = vst [vmem:[#allocation8 + $0x48] sm:$0xff] %v1216
      %1250 = vst [vmem:[#allocation8 + $0x50] sm:$0xff] %v1219
      %1251 = vst [vmem:[#allocation8 + $0x58] sm:$0xff] %v1222
      %1252 = vst [vmem:[#allocation8 + $0x60] sm:$0xff] %v1225
      %1253 = vst [vmem:[#allocation8 + $0x68] sm:$0xff] %v1228
      %1254 = vst [vmem:[#allocation8 + $0x70] sm:$0xff] %v1231
      %1255 = vst [vmem:[#allocation8 + $0x78] sm:$0xff] %v1234
    $region29: #{tpu_custom_call.1} parent=1 // pred_fallthru
      _
    %p1256 = scmp.gt.s32.totalorder 0, 0
    // Predicated region
    $region30: #{tpu_custom_call.1} parent=1 // pred_check
      %p1257 = pneg %p1256
    $region31: #{tpu_custom_call.1} parent=1 // pred_check_branch
      %1259 = sbr.rel (%p1257) target = $region33
    $region32: #{tpu_custom_call.1} parent=1 // pred_region
      %v1260 = vld [vmem:[#allocation8] sm:$0xff]
      %v1261 = vld [vmem:[#allocation8 + $0x8] sm:$0xff]
      %v1262 = vld [vmem:[#allocation8 + $0x10] sm:$0xff]
      %v1263 = vld [vmem:[#allocation8 + $0x18] sm:$0xff]
      %v1264 = vld [vmem:[#allocation8 + $0x20] sm:$0xff]
      %v1265 = vld [vmem:[#allocation8 + $0x28] sm:$0xff]
      %v1266 = vld [vmem:[#allocation8 + $0x30] sm:$0xff]
      %v1267 = vld [vmem:[#allocation8 + $0x38] sm:$0xff]
      %v1268 = vld [vmem:[#allocation8 + $0x40] sm:$0xff]
      %v1269 = vld [vmem:[#allocation8 + $0x48] sm:$0xff]
      %v1270 = vld [vmem:[#allocation8 + $0x50] sm:$0xff]
      %v1271 = vld [vmem:[#allocation8 + $0x58] sm:$0xff]
      %v1272 = vld [vmem:[#allocation8 + $0x60] sm:$0xff]
      %v1273 = vld [vmem:[#allocation8 + $0x68] sm:$0xff]
      %v1274 = vld [vmem:[#allocation8 + $0x70] sm:$0xff]
      %v1275 = vld [vmem:[#allocation8 + $0x78] sm:$0xff]
      %v1276 = vadd.f32 %v1260, %v1189
      %v1277 = vadd.f32 %v1261, %v1192
      %v1278 = vadd.f32 %v1262, %v1195
      %v1279 = vadd.f32 %v1263, %v1198
      %v1280 = vadd.f32 %v1264, %v1201
      %v1281 = vadd.f32 %v1265, %v1204
      %v1282 = vadd.f32 %v1266, %v1207
      %v1283 = vadd.f32 %v1267, %v1210
      %v1284 = vadd.f32 %v1268, %v1213
      %v1285 = vadd.f32 %v1269, %v1216
      %v1286 = vadd.f32 %v1270, %v1219
      %v1287 = vadd.f32 %v1271, %v1222
      %v1288 = vadd.f32 %v1272, %v1225
      %v1289 = vadd.f32 %v1273, %v1228
      %v1290 = vadd.f32 %v1274, %v1231
      %v1291 = vadd.f32 %v1275, %v1234
      %1292 = vst [vmem:[#allocation8] sm:$0xff] %v1276
      %1293 = vst [vmem:[#allocation8 + $0x8] sm:$0xff] %v1277
      %1294 = vst [vmem:[#allocation8 + $0x10] sm:$0xff] %v1278
      %1295 = vst [vmem:[#allocation8 + $0x18] sm:$0xff] %v1279
      %1296 = vst [vmem:[#allocation8 + $0x20] sm:$0xff] %v1280
      %1297 = vst [vmem:[#allocation8 + $0x28] sm:$0xff] %v1281
      %1298 = vst [vmem:[#allocation8 + $0x30] sm:$0xff] %v1282
      %1299 = vst [vmem:[#allocation8 + $0x38] sm:$0xff] %v1283
      %1300 = vst [vmem:[#allocation8 + $0x40] sm:$0xff] %v1284
      %1301 = vst [vmem:[#allocation8 + $0x48] sm:$0xff] %v1285
      %1302 = vst [vmem:[#allocation8 + $0x50] sm:$0xff] %v1286
      %1303 = vst [vmem:[#allocation8 + $0x58] sm:$0xff] %v1287
      %1304 = vst [vmem:[#allocation8 + $0x60] sm:$0xff] %v1288
      %1305 = vst [vmem:[#allocation8 + $0x68] sm:$0xff] %v1289
      %1306 = vst [vmem:[#allocation8 + $0x70] sm:$0xff] %v1290
      %1307 = vst [vmem:[#allocation8 + $0x78] sm:$0xff] %v1291
    $region33: #{tpu_custom_call.1} parent=1 // pred_fallthru
      _
    // Predicated region
    $region34: #{tpu_custom_call.1} parent=1 // pred_check
      _
    $region35: #{tpu_custom_call.1} parent=1 // pred_check_branch
      %1309 = sbr.rel (0) target = $region37
    $region36: #{tpu_custom_call.1} parent=1 // pred_region
      %1311 = vsyncadd [#allocation4], 0
      %s1312 = sshll.u32 [#allocation8], 4
      %s1313 = int_to_ptr.vmem [resolvable:$true] %s1312
      %s1314 = sshll.u32 %s3, 4
      %s1315 = int_to_ptr.hbm [resolvable:$true] %s1314
      %1320 = dma.vmem_to_hbm [thread:$0]  %s1313, 2048, %s1315, [#allocation4], 128, 128, 8
    $region37: #{tpu_custom_call.1} parent=1 // pred_fallthru
      _
    // Predicated region
    $region38: #{tpu_custom_call.1} parent=1 // pred_check
      _
    $region39: #{tpu_custom_call.1} parent=1 // pred_check_branch
      %1322 = sbr.rel (0) target = $region41
    $region40: #{tpu_custom_call.1} parent=1 // pred_region
      %1324 = dma.done [#allocation4], 2048
    $region41: #{tpu_custom_call.1} parent=1 // pred_fallthru
      _
    %1325 = vsyncpa [#allocation3], 1
    %1326 = vsyncpa [#allocation6], 1
    %1327 = vsyncpa [#allocation4], 1

</llo_original>
